<compile_context>
chip_gen: v5e
topology: v5e:2x2
jax: 0.10.0
libtpu: 0.0.40
codegen_flags: <defaults>
</compile_context>

<pallas_src>
import jax
import jax.numpy as jnp
from jax import lax
from jax.experimental import pallas as pl
from jax.experimental.pallas import tpu as pltpu


def _round_up(x, m):
    return ((x + m - 1) // m) * m


# --------------------------------------------------------------------------------------
# Pass 1: conv as a single im2col matmul per row tile + PER-TILE partial channel stats.
# Every grid step writes disjoint output blocks -> axis is safely "parallel" (megacore).
# --------------------------------------------------------------------------------------
def _conv_stats_kernel(p_ref, w_ref, y_ref, stats_ref):
    # p_ref: (block_m, KKC_pad) bf16 im2col patches
    # w_ref: (KKC_pad, C_pad)   bf16 weight matrix (resident: same block every step)
    # y_ref: (block_m, C_pad)   f32 raw conv output (pre-BN)
    # stats_ref: (1, 8, C_pad)  f32: row 0 = per-tile sum, row 1 = per-tile sum-of-squares
    y = jnp.dot(p_ref[...], w_ref[...], preferred_element_type=jnp.float32)
    y_ref[...] = y
    s = jnp.sum(y, axis=0, keepdims=True)                  # (1, C_pad)
    ss = jnp.sum(y * y, axis=0, keepdims=True)             # (1, C_pad)
    pad = jnp.zeros((6, y.shape[1]), jnp.float32)
    stats_ref[0] = jnp.concatenate([s, ss, pad], axis=0)   # full-block unmasked store


# --------------------------------------------------------------------------------------
# Pass 2: lane-dense fused per-channel affine (folded BN) + optional ReLU.
# Independent row tiles -> "parallel" grid axis.
# --------------------------------------------------------------------------------------
def _make_affine_relu_kernel(apply_relu, out_dtype):
    def kernel(y_ref, scale_ref, shift_ref, o_ref):
        y = y_ref[...] * scale_ref[...] + shift_ref[...]   # (block_m, C_pad) f32 FMA
        if apply_relu:
            y = jnp.maximum(y, 0.0)
        o_ref[...] = y.astype(out_dtype)
    return kernel


def conv_relu_block(x_nchw, weight_oihw, gamma, beta, *, stride=1, bn=True,
                    apply_relu=True, eps=1e-5, compute_dtype=jnp.bfloat16):
    """Pallas implementation of ConvReLUBlock.forward (NCHW in, NCHW out)."""
    N, Cin, H, W = x_nchw.shape
    Cout, Cin_w, K, K2 = weight_oihw.shape
    assert Cin == Cin_w and K == K2, "only groups=1, square kernels supported"

    pd = K // 2
    H_out = (H + 2 * pd - K) // stride + 1
    W_out = (W + 2 * pd - K) // stride + 1

    M = N * H_out * W_out            # rows of the im2col matmul
    KKC = K * K * Cin                # contraction size before padding
    KKC_pad = _round_up(KKC, 128)    # full 128-deep contraction for the MXU
    C_pad = _round_up(Cout, 128)     # lane-dense channel axis

    # ---- VMEM-aware row-tile sizing (double-buffered inputs + outputs per tile) ----
    vmem_budget = 24 * 1024 * 1024   # leave headroom under the 32 MiB scoped limit

    def _tile_bytes(bm):
        return (2 * bm * KKC_pad * 2      # patches tile (bf16), double-buffered
                + 2 * KKC_pad * C_pad * 2  # weights (bf16), double-buffered
                + 2 * bm * C_pad * 4       # y output tile (f32), double-buffered
                + 2 * 8 * C_pad * 4)       # stats tile

    block_m = 512
    while block_m > 128 and _tile_bytes(block_m) > vmem_budget:
        block_m //= 2
    block_m = min(block_m, _round_up(M, 128))
    M_pad = _round_up(M, block_m)
    n_tiles = M_pad // block_m
    vmem_limit = 32 * 1024 * 1024    # safe on v5e/v6e and within v7x's 64 MiB physical

    # ---- wrapper glue (layout only): NCHW -> NHWC, zero pad, im2col, channel pad ----
    x_nhwc = jnp.transpose(x_nchw, (0, 2, 3, 1)).astype(compute_dtype)
    x_p = jnp.pad(x_nhwc, ((0, 0), (pd, pd), (pd, pd), (0, 0)))
    h_span = (H_out - 1) * stride + 1
    w_span = (W_out - 1) * stride + 1
    taps = []
    for kh in range(K):
        for kw in range(K):
            taps.append(x_p[:, kh:kh + h_span:stride, kw:kw + w_span:stride, :])
    patches = jnp.concatenate(taps, axis=-1).reshape(M, KKC)
    patches = jnp.pad(patches, ((0, M_pad - M), (0, KKC_pad - KKC)))

    # HWIO weights flattened so column ordering matches the tap/channel ordering above.
    w_mat = jnp.transpose(weight_oihw, (2, 3, 1, 0)).reshape(KKC, Cout)
    w_mat = jnp.pad(w_mat, ((0, KKC_pad - KKC), (0, C_pad - Cout))).astype(compute_dtype)

    # ---------------------------- pass 1: conv + partial stats ----------------------------
    cost1 = pl.CostEstimate(
        flops=2 * M_pad * KKC_pad * C_pad + 3 * M_pad * C_pad,
        transcendentals=0,
        bytes_accessed=M_pad * KKC_pad * 2 + KKC_pad * C_pad * 2
                       + M_pad * C_pad * 4 + n_tiles * 8 * C_pad * 4)

    y_conv, stats = pl.pallas_call(
        _conv_stats_kernel,
        out_shape=(jax.ShapeDtypeStruct((M_pad, C_pad), jnp.float32),
                   jax.ShapeDtypeStruct((n_tiles, 8, C_pad), jnp.float32)),
        grid=(n_tiles,),
        in_specs=[pl.BlockSpec((block_m, KKC_pad), lambda i: (i, 0)),
                  pl.BlockSpec((KKC_pad, C_pad), lambda i: (0, 0))],
        out_specs=(pl.BlockSpec((block_m, C_pad), lambda i: (i, 0)),
                   pl.BlockSpec((1, 8, C_pad), lambda i: (i, 0, 0))),
        compiler_params=pltpu.CompilerParams(
            dimension_semantics=("parallel",),     # disjoint blocks -> 2 TCs on v7x
            vmem_limit_bytes=vmem_limit),
        cost_estimate=cost1,
    )(patches, w_mat)

    if not bn and not apply_relu:
        out_pad = y_conv                           # pure conv: no second pass needed
    else:
        # ---- tiny per-channel epilogue (1 x C_pad): fold BN into a single scale/shift ----
        if bn:
            csum = jnp.sum(stats[:, 0, :], axis=0, keepdims=True)     # (1, C_pad)
            csumsq = jnp.sum(stats[:, 1, :], axis=0, keepdims=True)   # (1, C_pad)
            mean = csum * (1.0 / float(M))
            var = csumsq * (1.0 / float(M)) - mean * mean             # biased variance
            inv_std = lax.rsqrt(var + float(eps))
            gamma_p = jnp.pad(jnp.reshape(gamma, (1, Cout)).astype(jnp.float32),
                              ((0, 0), (0, C_pad - Cout)))
            beta_p = jnp.pad(jnp.reshape(beta, (1, Cout)).astype(jnp.float32),
                             ((0, 0), (0, C_pad - Cout)))
            scale = gamma_p * inv_std
            shift = beta_p - mean * scale
        else:
            scale = jnp.ones((1, C_pad), jnp.float32)
            shift = jnp.zeros((1, C_pad), jnp.float32)

        # ---------------------- pass 2: fused affine + ReLU -----------------------
        kernel2 = _make_affine_relu_kernel(apply_relu, jnp.float32)
        cost2 = pl.CostEstimate(
            flops=3 * M_pad * C_pad,
            transcendentals=0,
            bytes_accessed=2 * M_pad * C_pad * 4 + 2 * C_pad * 4)

        out_pad = pl.pallas_call(
            kernel2,
            out_shape=jax.ShapeDtypeStruct((M_pad, C_pad), jnp.float32),
            grid=(n_tiles,),
            in_specs=[pl.BlockSpec((block_m, C_pad), lambda i: (i, 0)),
                      pl.BlockSpec((1, C_pad), lambda i: (0, 0)),
                      pl.BlockSpec((1, C_pad), lambda i: (0, 0))],
            out_specs=pl.BlockSpec((block_m, C_pad), lambda i: (i, 0)),
            compiler_params=pltpu.CompilerParams(
                dimension_semantics=("parallel",),
                vmem_limit_bytes=vmem_limit),
            cost_estimate=cost2,
        )(y_conv, scale, shift)

    # ---- wrapper glue: drop padding, back to NCHW ----
    out = out_pad[:M, :Cout].reshape(N, H_out, W_out, Cout)
    return jnp.transpose(out, (0, 3, 1, 2))


def _reference(x_nchw, weight_oihw, gamma, beta, *, stride=1, bn=True,
               apply_relu=True, eps=1e-5, compute_dtype=jnp.bfloat16):
    """Pure-JAX reference with identical bf16-input / f32-accumulate conv numerics."""
    K = weight_oihw.shape[-1]
    pd = K // 2
    y = lax.conv_general_dilated(
        x_nchw.astype(compute_dtype), weight_oihw.astype(compute_dtype),
        window_strides=(stride, stride), padding=[(pd, pd), (pd, pd)],
        dimension_numbers=("NCHW", "OIHW", "NCHW"),
        preferred_element_type=jnp.float32)
    if bn:
        mean = jnp.mean(y, axis=(0, 2, 3), keepdims=True)
        var = jnp.mean((y - mean) ** 2, axis=(0, 2, 3), keepdims=True)
        y = (y - mean) / jnp.sqrt(var + eps)
        y = y * gamma.reshape(1, -1, 1, 1) + beta.reshape(1, -1, 1, 1)
    if apply_relu:
        y = jnp.maximum(y, 0.0)
    return y


if __name__ == "__main__":
    # ConvReLUBlock(in_channels=4, out_channels=8, kernel_size=3, stride=1,
    #               bias=False, bn=True, af=ReLU)
    N, Cin, H, W = 2, 4, 16, 16
    Cout, K = 8, 3

    key = jax.random.PRNGKey(0)
    kx, kw, kg, kb = jax.random.split(key, 4)
    x = jax.random.normal(kx, (N, Cin, H, W), dtype=jnp.float32)
    weight = jax.random.normal(kw, (Cout, Cin, K, K), dtype=jnp.float32) * 0.1
    gamma = 1.0 + 0.1 * jax.random.normal(kg, (Cout,), dtype=jnp.float32)
    beta = 0.1 * jax.random.normal(kb, (Cout,), dtype=jnp.float32)

    out = conv_relu_block(x, weight, gamma, beta, stride=1, bn=True, apply_relu=True)
    out = jax.block_until_ready(out)

    ref = _reference(x, weight, gamma, beta, stride=1, bn=True, apply_relu=True)
    assert out.shape == ref.shape == (N, Cout, H, W)
    assert jnp.allclose(out, ref, rtol=5e-3, atol=5e-3), "mismatch vs reference"

    print("KERNEL_OK")
</pallas_src>

<mosaic_0001>
module attributes {stable_mosaic.version = 11 : i64} {
  func.func @_conv_stats_kernel(%arg0: i32, %arg1: memref<512x128xbf16, #tpu.memory_space<vmem>>, %arg2: memref<128x128xbf16, #tpu.memory_space<vmem>>, %arg3: memref<512x128xf32, #tpu.memory_space<vmem>>, %arg4: memref<1x8x128xf32, #tpu.memory_space<vmem>>) attributes {dimension_semantics = [#tpu.dimension_semantics<parallel>], iteration_bounds = array<i64: 1>, scalar_prefetch = 0 : i64, scratch_operands = 0 : i64, tpu.core_type = #tpu.core_type<tc>, window_params = [{transform_indices = @transform_0, window_bounds = array<i64: 512, 128>}, {pipeline_mode = #tpu.pipeline_mode<synchronous>, transform_indices = @transform_1, window_bounds = array<i64: 128, 128>}, {transform_indices = @transform_2, window_bounds = array<i64: 512, 128>}, {transform_indices = @transform_3, window_bounds = array<i64: 1, 8, 128>}]} {
    %c0 = arith.constant 0 : index
    %c0_0 = arith.constant 0 : index
    %0 = vector.load %arg1[%c0, %c0_0] : memref<512x128xbf16, #tpu.memory_space<vmem>>, vector<512x128xbf16>
    %c0_1 = arith.constant 0 : index
    %c0_2 = arith.constant 0 : index
    %1 = vector.load %arg2[%c0_1, %c0_2] : memref<128x128xbf16, #tpu.memory_space<vmem>>, vector<128x128xbf16>
    %cst = arith.constant dense<0.000000e+00> : vector<512x128xf32>
    %2 = tpu.matmul %0, %1, %cst {dimension_numbers = #tpu.dot_dimension_numbers<[1], [0], [0], [1], [0, 0, 1, 1], [], []>} : vector<512x128xbf16>, vector<128x128xbf16>, vector<512x128xf32> -> vector<512x128xf32>
    %c0_3 = arith.constant 0 : index
    %c0_4 = arith.constant 0 : index
    %3 = vector.load %arg3[%c0_3, %c0_4] : memref<512x128xf32, #tpu.memory_space<vmem>>, vector<512x128xf32>
    tpu.vector_store %arg3[%c0_3, %c0_4], %2 {strides = array<i32>} : memref<512x128xf32, #tpu.memory_space<vmem>>, vector<512x128xf32>,
    %cst_5 = arith.constant dense<0.000000e+00> : vector<128xf32>
    %4 = vector.multi_reduction <add>, %2, %cst_5 [0] : vector<512x128xf32> to vector<128xf32>
    %5 = vector.shape_cast %4 : vector<128xf32> to vector<1x128xf32>
    %6 = arith.mulf %2, %2 : vector<512x128xf32>
    %cst_6 = arith.constant dense<0.000000e+00> : vector<128xf32>
    %7 = vector.multi_reduction <add>, %6, %cst_6 [0] : vector<512x128xf32> to vector<128xf32>
    %8 = vector.shape_cast %7 : vector<128xf32> to vector<1x128xf32>
    %cst_7 = arith.constant 0.000000e+00 : f32
    %9 = vector.broadcast %cst_7 : f32 to vector<6x128xf32>
    %10 = tpu.concatenate %5, %8, %9 in 0 : vector<1x128xf32>, vector<1x128xf32>, vector<6x128xf32> -> vector<8x128xf32>
    %c0_8 = arith.constant 0 : index
    %c0_9 = arith.constant 0 : index
    %c0_10 = arith.constant 0 : index
    %11 = vector.load %arg4[%c0_8, %c0_9, %c0_10] : memref<1x8x128xf32, #tpu.memory_space<vmem>>, vector<1x8x128xf32>
    %12 = vector.shape_cast %11 : vector<1x8x128xf32> to vector<8x128xf32>
    %13 = vector.shape_cast %10 : vector<8x128xf32> to vector<1x8x128xf32>
    tpu.vector_store %arg4[%c0_8, %c0_9, %c0_10], %13 {strides = array<i32>} : memref<1x8x128xf32, #tpu.memory_space<vmem>>, vector<1x8x128xf32>,
    return
  }
  func.func @transform_0(%arg0: i32) -> (i32, i32) {
    %c0_i32 = arith.constant 0 : i32
    %c0_i32_0 = arith.constant 0 : i32
    return %arg0, %c0_i32 : i32, i32
  }
  func.func @transform_1(%arg0: i32) -> (i32, i32) {
    %c0_i32 = arith.constant 0 : i32
    %c0_i32_0 = arith.constant 0 : i32
    %c0_i32_1 = arith.constant 0 : i32
    return %c0_i32, %c0_i32_0 : i32, i32
  }
  func.func @transform_2(%arg0: i32) -> (i32, i32) {
    %c0_i32 = arith.constant 0 : i32
    %c0_i32_0 = arith.constant 0 : i32
    return %arg0, %c0_i32 : i32, i32
  }
  func.func @transform_3(%arg0: i32) -> (i32, i32, i32) {
    %c0_i32 = arith.constant 0 : i32
    %c0_i32_0 = arith.constant 0 : i32
    %c0_i32_1 = arith.constant 0 : i32
    return %arg0, %c0_i32, %c0_i32_0 : i32, i32, i32
  }
}

</mosaic_0001>

<llo_original>
// kernel: tpu_custom_call.1
$region0: #{tpu_custom_call.1}
  #allocation0 [shape = 'u32[]', space=smem, size = 0x4, offset = 0x4, fixed_abs, tag = 'smem constant byte address 0x4 - core index']
  #allocation1 [shape = 'u32[72,128]{1,0:T(1,128)}', space=vmem, size = 0x9000, scoped, tag = 'internal scratch']
  %s0 = inlined_call_operand.hbm [shape: bf16[512,128], index: 0, kind: input, shape index: {}]
  %s1 = inlined_call_operand.hbm [shape: bf16[128,128], index: 1, kind: input, shape index: {}]
  %s2 = inlined_call_operand.hbm [shape: f32[512,128], index: 2, kind: output, shape index: {0}]
  %s3 = inlined_call_operand.hbm [shape: f32[1,8,128], index: 3, kind: output, shape index: {1}]
  %4 = xla_tuple %s2, %s3
  %s5 = sld [smem:[#allocation0]]
  $region34: #{tpu_custom_call.1} parent=0
    _
  %s7 = ssub.s32 1, %s5
  %s8 = scalar_select 0, %s7, %s5
  $region1: #{tpu_custom_call.1} parent=0
    #allocation2 [shape = 'u8[131072]{0}', space=vmem, size = 0x20000, scoped, tag = 'input window, operand 0, single buffered']
    #allocation3 [shape = 's32[1]{0}', space=sflag, size = 0x4, scoped, tag = 'scoped memory for tpu_custom_call.1']
    #allocation4 [shape = 's32[1]{0}', space=sflag, size = 0x4, scoped, tag = 'scoped memory for tpu_custom_call.1']
    #allocation5 [shape = 'u8[32768]{0}', space=vmem, size = 0x8000, scoped, tag = 'input window, operand 1, single buffered']
    #allocation6 [shape = 's32[1]{0}', space=sflag, size = 0x4, scoped, tag = 'scoped memory for tpu_custom_call.1']
    #allocation7 [shape = 'u8[262144]{0}', space=vmem, size = 0x40000, scoped, tag = 'output window, operand 0, single buffered']
    #allocation8 [shape = 'u8[4096]{0}', space=vmem, size = 0x1000, scoped, tag = 'output window, operand 1, single buffered']
    #allocation9 [shape = 's32[1]{0}', space=sflag, size = 0x4, scoped, tag = 'scoped memory for tpu_custom_call.1']
    %9 = vsyncpa [#allocation3], 0
    %10 = vsyncpa [#allocation6], 0
    %11 = vsyncpa [#allocation4], 0
    %12 = vsyncpa [#allocation9], 0
    // Predicated region
    $region2: #{tpu_custom_call.1} parent=1 // pred_check
      _
    $region3: #{tpu_custom_call.1} parent=1 // pred_check_branch
      %14 = sbr.rel (0) target = $region5
    $region4: #{tpu_custom_call.1} parent=1 // pred_region
      %16 = vsyncadd [#allocation3], 0
      %s17 = sshll.u32 %s0, 4
      %s18 = int_to_ptr.hbm [resolvable:$true] %s17
      %s19 = sshll.u32 [#allocation2], 4
      %s20 = int_to_ptr.vmem [resolvable:$true] %s19
      %25 = dma.hbm_to_vmem [thread:$0]  %s18, 4096, %s20, [#allocation3], 64, 64, 4
    $region5: #{tpu_custom_call.1} parent=1 // pred_fallthru
      _
    // Predicated region
    $region6: #{tpu_custom_call.1} parent=1 // pred_check
      _
    $region7: #{tpu_custom_call.1} parent=1 // pred_check_branch
      %27 = sbr.rel (0) target = $region9
    $region8: #{tpu_custom_call.1} parent=1 // pred_region
      %29 = vsyncadd [#allocation6], 0
      %s30 = sshll.u32 %s1, 4
      %s31 = int_to_ptr.hbm [resolvable:$true] %s30
      %s32 = sshll.u32 [#allocation5], 4
      %s33 = int_to_ptr.vmem [resolvable:$true] %s32
      %38 = dma.hbm_to_vmem [thread:$0]  %s31, 1024, %s33, [#allocation6], 64, 64, 4
    $region9: #{tpu_custom_call.1} parent=1 // pred_fallthru
      _
    // Predicated region
    $region10: #{tpu_custom_call.1} parent=1 // pred_check
      _
    $region11: #{tpu_custom_call.1} parent=1 // pred_check_branch
      %40 = sbr.rel (0) target = $region13
    $region12: #{tpu_custom_call.1} parent=1 // pred_region
      %42 = dma.done [#allocation3], 4096
    $region13: #{tpu_custom_call.1} parent=1 // pred_fallthru
      _
    // Predicated region
    $region14: #{tpu_custom_call.1} parent=1 // pred_check
      _
    $region15: #{tpu_custom_call.1} parent=1 // pred_check_branch
      %44 = sbr.rel (0) target = $region17
    $region16: #{tpu_custom_call.1} parent=1 // pred_region
      %46 = dma.done [#allocation6], 1024
    $region17: #{tpu_custom_call.1} parent=1 // pred_fallthru
      _
    %v47 = vld [vmem:[#allocation2] sm:$0xf]
    %v48 = vld [vmem:[#allocation2 + $0x4] sm:$0xf]
    %v49 = vld [vmem:[#allocation2 + $0x8] sm:$0xf]
    %v50 = vld [vmem:[#allocation2 + $0xc] sm:$0xf]
    %v51 = vld [vmem:[#allocation2 + $0x10] sm:$0xf]
    %v52 = vld [vmem:[#allocation2 + $0x14] sm:$0xf]
    %v53 = vld [vmem:[#allocation2 + $0x18] sm:$0xf]
    %v54 = vld [vmem:[#allocation2 + $0x1c] sm:$0xf]
    %v55 = vld [vmem:[#allocation2 + $0x20] sm:$0xf]
    %v56 = vld [vmem:[#allocation2 + $0x24] sm:$0xf]
    %v57 = vld [vmem:[#allocation2 + $0x28] sm:$0xf]
    %v58 = vld [vmem:[#allocation2 + $0x2c] sm:$0xf]
    %v59 = vld [vmem:[#allocation2 + $0x30] sm:$0xf]
    %v60 = vld [vmem:[#allocation2 + $0x34] sm:$0xf]
    %v61 = vld [vmem:[#allocation2 + $0x38] sm:$0xf]
    %v62 = vld [vmem:[#allocation2 + $0x3c] sm:$0xf]
    %v63 = vld [vmem:[#allocation2 + $0x40] sm:$0xf]
    %v64 = vld [vmem:[#allocation2 + $0x44] sm:$0xf]
    %v65 = vld [vmem:[#allocation2 + $0x48] sm:$0xf]
    %v66 = vld [vmem:[#allocation2 + $0x4c] sm:$0xf]
    %v67 = vld [vmem:[#allocation2 + $0x50] sm:$0xf]
    %v68 = vld [vmem:[#allocation2 + $0x54] sm:$0xf]
    %v69 = vld [vmem:[#allocation2 + $0x58] sm:$0xf]
    %v70 = vld [vmem:[#allocation2 + $0x5c] sm:$0xf]
    %v71 = vld [vmem:[#allocation2 + $0x60] sm:$0xf]
    %v72 = vld [vmem:[#allocation2 + $0x64] sm:$0xf]
    %v73 = vld [vmem:[#allocation2 + $0x68] sm:$0xf]
    %v74 = vld [vmem:[#allocation2 + $0x6c] sm:$0xf]
    %v75 = vld [vmem:[#allocation2 + $0x70] sm:$0xf]
    %v76 = vld [vmem:[#allocation2 + $0x74] sm:$0xf]
    %v77 = vld [vmem:[#allocation2 + $0x78] sm:$0xf]
    %v78 = vld [vmem:[#allocation2 + $0x7c] sm:$0xf]
    %v79 = vld [vmem:[#allocation2 + $0x80] sm:$0xf]
    %v80 = vld [vmem:[#allocation2 + $0x84] sm:$0xf]
    %v81 = vld [vmem:[#allocation2 + $0x88] sm:$0xf]
    %v82 = vld [vmem:[#allocation2 + $0x8c] sm:$0xf]
    %v83 = vld [vmem:[#allocation2 + $0x90] sm:$0xf]
    %v84 = vld [vmem:[#allocation2 + $0x94] sm:$0xf]
    %v85 = vld [vmem:[#allocation2 + $0x98] sm:$0xf]
    %v86 = vld [vmem:[#allocation2 + $0x9c] sm:$0xf]
    %v87 = vld [vmem:[#allocation2 + $0xa0] sm:$0xf]
    %v88 = vld [vmem:[#allocation2 + $0xa4] sm:$0xf]
    %v89 = vld [vmem:[#allocation2 + $0xa8] sm:$0xf]
    %v90 = vld [vmem:[#allocation2 + $0xac] sm:$0xf]
    %v91 = vld [vmem:[#allocation2 + $0xb0] sm:$0xf]
    %v92 = vld [vmem:[#allocation2 + $0xb4] sm:$0xf]
    %v93 = vld [vmem:[#allocation2 + $0xb8] sm:$0xf]
    %v94 = vld [vmem:[#allocation2 + $0xbc] sm:$0xf]
    %v95 = vld [vmem:[#allocation2 + $0xc0] sm:$0xf]
    %v96 = vld [vmem:[#allocation2 + $0xc4] sm:$0xf]
    %v97 = vld [vmem:[#allocation2 + $0xc8] sm:$0xf]
    %v98 = vld [vmem:[#allocation2 + $0xcc] sm:$0xf]
    %v99 = vld [vmem:[#allocation2 + $0xd0] sm:$0xf]
    %v100 = vld [vmem:[#allocation2 + $0xd4] sm:$0xf]
    %v101 = vld [vmem:[#allocation2 + $0xd8] sm:$0xf]
    %v102 = vld [vmem:[#allocation2 + $0xdc] sm:$0xf]
    %v103 = vld [vmem:[#allocation2 + $0xe0] sm:$0xf]
    %v104 = vld [vmem:[#allocation2 + $0xe4] sm:$0xf]
    %v105 = vld [vmem:[#allocation2 + $0xe8] sm:$0xf]
    %v106 = vld [vmem:[#allocation2 + $0xec] sm:$0xf]
    %v107 = vld [vmem:[#allocation2 + $0xf0] sm:$0xf]
    %v108 = vld [vmem:[#allocation2 + $0xf4] sm:$0xf]
    %v109 = vld [vmem:[#allocation2 + $0xf8] sm:$0xf]
    %v110 = vld [vmem:[#allocation2 + $0xfc] sm:$0xf]
    %v111 = vld [vmem:[#allocation5] sm:$0xf]
    %v112 = vld [vmem:[#allocation5 + $0x4] sm:$0xf]
    %v113 = vld [vmem:[#allocation5 + $0x8] sm:$0xf]
    %v114 = vld [vmem:[#allocation5 + $0xc] sm:$0xf]
    %v115 = vld [vmem:[#allocation5 + $0x10] sm:$0xf]
    %v116 = vld [vmem:[#allocation5 + $0x14] sm:$0xf]
    %v117 = vld [vmem:[#allocation5 + $0x18] sm:$0xf]
    %v118 = vld [vmem:[#allocation5 + $0x1c] sm:$0xf]
    %v119 = vld [vmem:[#allocation5 + $0x20] sm:$0xf]
    %v120 = vld [vmem:[#allocation5 + $0x24] sm:$0xf]
    %v121 = vld [vmem:[#allocation5 + $0x28] sm:$0xf]
    %v122 = vld [vmem:[#allocation5 + $0x2c] sm:$0xf]
    %v123 = vld [vmem:[#allocation5 + $0x30] sm:$0xf]
    %v124 = vld [vmem:[#allocation5 + $0x34] sm:$0xf]
    %v125 = vld [vmem:[#allocation5 + $0x38] sm:$0xf]
    %v126 = vld [vmem:[#allocation5 + $0x3c] sm:$0xf]
    %v191 = vunpack.c.l.b16 %v47
    %v192 = vunpack.c.l.b16 %v48
    %v193 = vunpack.c.l.b16 %v49
    %v194 = vunpack.c.l.b16 %v50
    %v195 = vunpack.c.l.b16 %v51
    %v196 = vunpack.c.l.b16 %v52
    %v197 = vunpack.c.l.b16 %v53
    %v198 = vunpack.c.l.b16 %v54
    %v199 = vunpack.c.l.b16 %v55
    %v200 = vunpack.c.l.b16 %v56
    %v201 = vunpack.c.l.b16 %v57
    %v202 = vunpack.c.l.b16 %v58
    %v203 = vunpack.c.l.b16 %v59
    %v204 = vunpack.c.l.b16 %v60
    %v205 = vunpack.c.l.b16 %v61
    %v206 = vunpack.c.l.b16 %v62
    %v207 = vunpack.c.l.b16 %v63
    %v208 = vunpack.c.l.b16 %v64
    %v209 = vunpack.c.l.b16 %v65
    %v210 = vunpack.c.l.b16 %v66
    %v211 = vunpack.c.l.b16 %v67
    %v212 = vunpack.c.l.b16 %v68
    %v213 = vunpack.c.l.b16 %v69
    %v214 = vunpack.c.l.b16 %v70
    %v215 = vunpack.c.l.b16 %v71
    %v216 = vunpack.c.l.b16 %v72
    %v217 = vunpack.c.l.b16 %v73
    %v218 = vunpack.c.l.b16 %v74
    %v219 = vunpack.c.l.b16 %v75
    %v220 = vunpack.c.l.b16 %v76
    %v221 = vunpack.c.l.b16 %v77
    %v222 = vunpack.c.l.b16 %v78
    %v223 = vunpack.c.l.b16 %v79
    %v224 = vunpack.c.l.b16 %v80
    %v225 = vunpack.c.l.b16 %v81
    %v226 = vunpack.c.l.b16 %v82
    %v227 = vunpack.c.l.b16 %v83
    %v228 = vunpack.c.l.b16 %v84
    %v229 = vunpack.c.l.b16 %v85
    %v230 = vunpack.c.l.b16 %v86
    %v231 = vunpack.c.l.b16 %v87
    %v232 = vunpack.c.l.b16 %v88
    %v233 = vunpack.c.l.b16 %v89
    %v234 = vunpack.c.l.b16 %v90
    %v235 = vunpack.c.l.b16 %v91
    %v236 = vunpack.c.l.b16 %v92
    %v237 = vunpack.c.l.b16 %v93
    %v238 = vunpack.c.l.b16 %v94
    %v239 = vunpack.c.l.b16 %v95
    %v240 = vunpack.c.l.b16 %v96
    %v241 = vunpack.c.l.b16 %v97
    %v242 = vunpack.c.l.b16 %v98
    %v243 = vunpack.c.l.b16 %v99
    %v244 = vunpack.c.l.b16 %v100
    %v245 = vunpack.c.l.b16 %v101
    %v246 = vunpack.c.l.b16 %v102
    %v247 = vunpack.c.l.b16 %v103
    %v248 = vunpack.c.l.b16 %v104
    %v249 = vunpack.c.l.b16 %v105
    %v250 = vunpack.c.l.b16 %v106
    %v251 = vunpack.c.l.b16 %v107
    %v252 = vunpack.c.l.b16 %v108
    %v253 = vunpack.c.l.b16 %v109
    %v254 = vunpack.c.l.b16 %v110
    %v255 = vpack.c.b16 %v192, %v191
    %v256 = vpack.c.b16 %v194, %v193
    %v257 = vpack.c.b16 %v196, %v195
    %v258 = vpack.c.b16 %v198, %v197
    %v259 = vpack.c.b16 %v200, %v199
    %v260 = vpack.c.b16 %v202, %v201
    %v261 = vpack.c.b16 %v204, %v203
    %v262 = vpack.c.b16 %v206, %v205
    %v263 = vpack.c.b16 %v208, %v207
    %v264 = vpack.c.b16 %v210, %v209
    %v265 = vpack.c.b16 %v212, %v211
    %v266 = vpack.c.b16 %v214, %v213
    %v267 = vpack.c.b16 %v216, %v215
    %v268 = vpack.c.b16 %v218, %v217
    %v269 = vpack.c.b16 %v220, %v219
    %v270 = vpack.c.b16 %v222, %v221
    %v271 = vpack.c.b16 %v224, %v223
    %v272 = vpack.c.b16 %v226, %v225
    %v273 = vpack.c.b16 %v228, %v227
    %v274 = vpack.c.b16 %v230, %v229
    %v275 = vpack.c.b16 %v232, %v231
    %v276 = vpack.c.b16 %v234, %v233
    %v277 = vpack.c.b16 %v236, %v235
    %v278 = vpack.c.b16 %v238, %v237
    %v279 = vpack.c.b16 %v240, %v239
    %v280 = vpack.c.b16 %v242, %v241
    %v281 = vpack.c.b16 %v244, %v243
    %v282 = vpack.c.b16 %v246, %v245
    %v283 = vpack.c.b16 %v248, %v247
    %v284 = vpack.c.b16 %v250, %v249
    %v285 = vpack.c.b16 %v252, %v251
    %v286 = vpack.c.b16 %v254, %v253
    %v335 = vunpack.c.l.b16 %v111
    %v336 = vunpack.c.l.b16 %v112
    %v337 = vunpack.c.l.b16 %v113
    %v338 = vunpack.c.l.b16 %v114
    %v339 = vunpack.c.l.b16 %v115
    %v340 = vunpack.c.l.b16 %v116
    %v341 = vunpack.c.l.b16 %v117
    %v342 = vunpack.c.l.b16 %v118
    %v343 = vunpack.c.l.b16 %v119
    %v344 = vunpack.c.l.b16 %v120
    %v345 = vunpack.c.l.b16 %v121
    %v346 = vunpack.c.l.b16 %v122
    %v347 = vunpack.c.l.b16 %v123
    %v348 = vunpack.c.l.b16 %v124
    %v349 = vunpack.c.l.b16 %v125
    %v350 = vunpack.c.l.b16 %v126
    %v351 = vpack.c.b16 %v336, %v335
    %v352 = vpack.c.b16 %v338, %v337
    %v353 = vpack.c.b16 %v340, %v339
    %v354 = vpack.c.b16 %v342, %v341
    %v355 = vpack.c.b16 %v344, %v343
    %v356 = vpack.c.b16 %v346, %v345
    %v357 = vpack.c.b16 %v348, %v347
    %v358 = vpack.c.b16 %v350, %v349
    %367 = vmatpush.bf16.msra.mxu0 %v358
    %368 = vmatpush.bf16.msra.mxu0 %v357
    %369 = vmatpush.bf16.msra.mxu0 %v356
    %370 = vmatpush.bf16.msra.mxu0 %v355
    %371 = vmatpush.bf16.msra.mxu0 %v354
    %372 = vmatpush.bf16.msra.mxu0 %v353
    %373 = vmatpush.bf16.msra.mxu0 %v352
    %374 = vmatpush.bf16.msra.mxu0 %v351
    %375 = vmatmul.bf16.gmra.mxu0 %v255
    %v376 = vpop.f32.mrf.mxu0
    %v377 = vadd.f32 0.0, %v376
    %v378 = vpop.f32.mrf.mxu0
    %v379 = vadd.f32 0.0, %v378
    %380 = vmatmul.bf16.gmra.mxu0 %v256
    %v381 = vpop.f32.mrf.mxu0
    %v382 = vadd.f32 0.0, %v381
    %v383 = vpop.f32.mrf.mxu0
    %v384 = vadd.f32 0.0, %v383
    %385 = vmatmul.bf16.gmra.mxu0 %v257
    %v386 = vpop.f32.mrf.mxu0
    %v387 = vadd.f32 0.0, %v386
    %v388 = vpop.f32.mrf.mxu0
    %v389 = vadd.f32 0.0, %v388
    %390 = vmatmul.bf16.gmra.mxu0 %v258
    %v391 = vpop.f32.mrf.mxu0
    %v392 = vadd.f32 0.0, %v391
    %v393 = vpop.f32.mrf.mxu0
    %v394 = vadd.f32 0.0, %v393
    %395 = vmatmul.bf16.gmra.mxu0 %v259
    %v396 = vpop.f32.mrf.mxu0
    %v397 = vadd.f32 0.0, %v396
    %v398 = vpop.f32.mrf.mxu0
    %v399 = vadd.f32 0.0, %v398
    %400 = vmatmul.bf16.gmra.mxu0 %v260
    %v401 = vpop.f32.mrf.mxu0
    %v402 = vadd.f32 0.0, %v401
    %v403 = vpop.f32.mrf.mxu0
    %v404 = vadd.f32 0.0, %v403
    %405 = vmatmul.bf16.gmra.mxu0 %v261
    %v406 = vpop.f32.mrf.mxu0
    %v407 = vadd.f32 0.0, %v406
    %v408 = vpop.f32.mrf.mxu0
    %v409 = vadd.f32 0.0, %v408
    %410 = vmatmul.bf16.gmra.mxu0 %v262
    %v411 = vpop.f32.mrf.mxu0
    %v412 = vadd.f32 0.0, %v411
    %v413 = vpop.f32.mrf.mxu0
    %v414 = vadd.f32 0.0, %v413
    %415 = vmatmul.bf16.gmra.mxu0 %v263
    %v416 = vpop.f32.mrf.mxu0
    %v417 = vadd.f32 0.0, %v416
    %v418 = vpop.f32.mrf.mxu0
    %v419 = vadd.f32 0.0, %v418
    %420 = vmatmul.bf16.gmra.mxu0 %v264
    %v421 = vpop.f32.mrf.mxu0
    %v422 = vadd.f32 0.0, %v421
    %v423 = vpop.f32.mrf.mxu0
    %v424 = vadd.f32 0.0, %v423
    %425 = vmatmul.bf16.gmra.mxu0 %v265
    %v426 = vpop.f32.mrf.mxu0
    %v427 = vadd.f32 0.0, %v426
    %v428 = vpop.f32.mrf.mxu0
    %v429 = vadd.f32 0.0, %v428
    %430 = vmatmul.bf16.gmra.mxu0 %v266
    %v431 = vpop.f32.mrf.mxu0
    %v432 = vadd.f32 0.0, %v431
    %v433 = vpop.f32.mrf.mxu0
    %v434 = vadd.f32 0.0, %v433
    %435 = vmatmul.bf16.gmra.mxu0 %v267
    %v436 = vpop.f32.mrf.mxu0
    %v437 = vadd.f32 0.0, %v436
    %v438 = vpop.f32.mrf.mxu0
    %v439 = vadd.f32 0.0, %v438
    %440 = vmatmul.bf16.gmra.mxu0 %v268
    %v441 = vpop.f32.mrf.mxu0
    %v442 = vadd.f32 0.0, %v441
    %v443 = vpop.f32.mrf.mxu0
    %v444 = vadd.f32 0.0, %v443
    %445 = vmatmul.bf16.gmra.mxu0 %v269
    %v446 = vpop.f32.mrf.mxu0
    %v447 = vadd.f32 0.0, %v446
    %v448 = vpop.f32.mrf.mxu0
    %v449 = vadd.f32 0.0, %v448
    %450 = vmatmul.bf16.gmra.mxu0 %v270
    %v451 = vpop.f32.mrf.mxu0
    %v452 = vadd.f32 0.0, %v451
    %v453 = vpop.f32.mrf.mxu0
    %v454 = vadd.f32 0.0, %v453
    %455 = vmatmul.bf16.gmra.mxu0 %v271
    %v456 = vpop.f32.mrf.mxu0
    %v457 = vadd.f32 0.0, %v456
    %v458 = vpop.f32.mrf.mxu0
    %v459 = vadd.f32 0.0, %v458
    %460 = vmatmul.bf16.gmra.mxu0 %v272
    %v461 = vpop.f32.mrf.mxu0
    %v462 = vadd.f32 0.0, %v461
    %v463 = vpop.f32.mrf.mxu0
    %v464 = vadd.f32 0.0, %v463
    %465 = vmatmul.bf16.gmra.mxu0 %v273
    %v466 = vpop.f32.mrf.mxu0
    %v467 = vadd.f32 0.0, %v466
    %v468 = vpop.f32.mrf.mxu0
    %v469 = vadd.f32 0.0, %v468
    %470 = vmatmul.bf16.gmra.mxu0 %v274
    %v471 = vpop.f32.mrf.mxu0
    %v472 = vadd.f32 0.0, %v471
    %v473 = vpop.f32.mrf.mxu0
    %v474 = vadd.f32 0.0, %v473
    %475 = vmatmul.bf16.gmra.mxu0 %v275
    %v476 = vpop.f32.mrf.mxu0
    %v477 = vadd.f32 0.0, %v476
    %v478 = vpop.f32.mrf.mxu0
    %v479 = vadd.f32 0.0, %v478
    %480 = vmatmul.bf16.gmra.mxu0 %v276
    %v481 = vpop.f32.mrf.mxu0
    %v482 = vadd.f32 0.0, %v481
    %v483 = vpop.f32.mrf.mxu0
    %v484 = vadd.f32 0.0, %v483
    %485 = vmatmul.bf16.gmra.mxu0 %v277
    %v486 = vpop.f32.mrf.mxu0
    %v487 = vadd.f32 0.0, %v486
    %v488 = vpop.f32.mrf.mxu0
    %v489 = vadd.f32 0.0, %v488
    %490 = vmatmul.bf16.gmra.mxu0 %v278
    %v491 = vpop.f32.mrf.mxu0
    %v492 = vadd.f32 0.0, %v491
    %v493 = vpop.f32.mrf.mxu0
    %v494 = vadd.f32 0.0, %v493
    %495 = vmatmul.bf16.gmra.mxu0 %v279
    %v496 = vpop.f32.mrf.mxu0
    %v497 = vadd.f32 0.0, %v496
    %v498 = vpop.f32.mrf.mxu0
    %v499 = vadd.f32 0.0, %v498
    %500 = vmatmul.bf16.gmra.mxu0 %v280
    %v501 = vpop.f32.mrf.mxu0
    %v502 = vadd.f32 0.0, %v501
    %v503 = vpop.f32.mrf.mxu0
    %v504 = vadd.f32 0.0, %v503
    %505 = vmatmul.bf16.gmra.mxu0 %v281
    %v506 = vpop.f32.mrf.mxu0
    %v507 = vadd.f32 0.0, %v506
    %v508 = vpop.f32.mrf.mxu0
    %v509 = vadd.f32 0.0, %v508
    %510 = vmatmul.bf16.gmra.mxu0 %v282
    %v511 = vpop.f32.mrf.mxu0
    %v512 = vadd.f32 0.0, %v511
    %v513 = vpop.f32.mrf.mxu0
    %v514 = vadd.f32 0.0, %v513
    %515 = vmatmul.bf16.gmra.mxu0 %v283
    %v516 = vpop.f32.mrf.mxu0
    %v517 = vadd.f32 0.0, %v516
    %v518 = vpop.f32.mrf.mxu0
    %v519 = vadd.f32 0.0, %v518
    %520 = vmatmul.bf16.gmra.mxu0 %v284
    %v521 = vpop.f32.mrf.mxu0
    %v522 = vadd.f32 0.0, %v521
    %v523 = vpop.f32.mrf.mxu0
    %v524 = vadd.f32 0.0, %v523
    %525 = vmatmul.bf16.gmra.mxu0 %v285
    %v526 = vpop.f32.mrf.mxu0
    %v527 = vadd.f32 0.0, %v526
    %v528 = vpop.f32.mrf.mxu0
    %v529 = vadd.f32 0.0, %v528
    %530 = vmatmul.bf16.gmra.mxu0 %v286
    %v531 = vpop.f32.mrf.mxu0
    %v532 = vadd.f32 0.0, %v531
    %v533 = vpop.f32.mrf.mxu0
    %v534 = vadd.f32 0.0, %v533
    %535 = vdwg.mxu0
    %536 = vst [vmem:[#allocation7] sm:$0xff] %v377
    %537 = vst [vmem:[#allocation7 + $0x8] sm:$0xff] %v379
    %538 = vst [vmem:[#allocation7 + $0x10] sm:$0xff] %v382
    %539 = vst [vmem:[#allocation7 + $0x18] sm:$0xff] %v384
    %540 = vst [vmem:[#allocation7 + $0x20] sm:$0xff] %v387
    %541 = vst [vmem:[#allocation7 + $0x28] sm:$0xff] %v389
    %542 = vst [vmem:[#allocation7 + $0x30] sm:$0xff] %v392
    %543 = vst [vmem:[#allocation7 + $0x38] sm:$0xff] %v394
    %544 = vst [vmem:[#allocation7 + $0x40] sm:$0xff] %v397
    %545 = vst [vmem:[#allocation7 + $0x48] sm:$0xff] %v399
    %546 = vst [vmem:[#allocation7 + $0x50] sm:$0xff] %v402
    %547 = vst [vmem:[#allocation7 + $0x58] sm:$0xff] %v404
    %548 = vst [vmem:[#allocation7 + $0x60] sm:$0xff] %v407
    %549 = vst [vmem:[#allocation7 + $0x68] sm:$0xff] %v409
    %550 = vst [vmem:[#allocation7 + $0x70] sm:$0xff] %v412
    %551 = vst [vmem:[#allocation7 + $0x78] sm:$0xff] %v414
    %552 = vst [vmem:[#allocation7 + $0x80] sm:$0xff] %v417
    %553 = vst [vmem:[#allocation7 + $0x88] sm:$0xff] %v419
    %554 = vst [vmem:[#allocation7 + $0x90] sm:$0xff] %v422
    %555 = vst [vmem:[#allocation7 + $0x98] sm:$0xff] %v424
    %556 = vst [vmem:[#allocation7 + $0xa0] sm:$0xff] %v427
    %557 = vst [vmem:[#allocation7 + $0xa8] sm:$0xff] %v429
    %558 = vst [vmem:[#allocation7 + $0xb0] sm:$0xff] %v432
    %559 = vst [vmem:[#allocation7 + $0xb8] sm:$0xff] %v434
    %560 = vst [vmem:[#allocation7 + $0xc0] sm:$0xff] %v437
    %561 = vst [vmem:[#allocation7 + $0xc8] sm:$0xff] %v439
    %562 = vst [vmem:[#allocation7 + $0xd0] sm:$0xff] %v442
    %563 = vst [vmem:[#allocation7 + $0xd8] sm:$0xff] %v444
    %564 = vst [vmem:[#allocation7 + $0xe0] sm:$0xff] %v447
    %565 = vst [vmem:[#allocation7 + $0xe8] sm:$0xff] %v449
    %566 = vst [vmem:[#allocation7 + $0xf0] sm:$0xff] %v452
    %567 = vst [vmem:[#allocation7 + $0xf8] sm:$0xff] %v454
    %568 = vst [vmem:[#allocation7 + $0x100] sm:$0xff] %v457
    %569 = vst [vmem:[#allocation7 + $0x108] sm:$0xff] %v459
    %570 = vst [vmem:[#allocation7 + $0x110] sm:$0xff] %v462
    %571 = vst [vmem:[#allocation7 + $0x118] sm:$0xff] %v464
    %572 = vst [vmem:[#allocation7 + $0x120] sm:$0xff] %v467
    %573 = vst [vmem:[#allocation7 + $0x128] sm:$0xff] %v469
    %574 = vst [vmem:[#allocation7 + $0x130] sm:$0xff] %v472
    %575 = vst [vmem:[#allocation7 + $0x138] sm:$0xff] %v474
    %576 = vst [vmem:[#allocation7 + $0x140] sm:$0xff] %v477
    %577 = vst [vmem:[#allocation7 + $0x148] sm:$0xff] %v479
    %578 = vst [vmem:[#allocation7 + $0x150] sm:$0xff] %v482
    %579 = vst [vmem:[#allocation7 + $0x158] sm:$0xff] %v484
    %580 = vst [vmem:[#allocation7 + $0x160] sm:$0xff] %v487
    %581 = vst [vmem:[#allocation7 + $0x168] sm:$0xff] %v489
    %582 = vst [vmem:[#allocation7 + $0x170] sm:$0xff] %v492
    %583 = vst [vmem:[#allocation7 + $0x178] sm:$0xff] %v494
    %584 = vst [vmem:[#allocation7 + $0x180] sm:$0xff] %v497
    %585 = vst [vmem:[#allocation7 + $0x188] sm:$0xff] %v499
    %586 = vst [vmem:[#allocation7 + $0x190] sm:$0xff] %v502
    %587 = vst [vmem:[#allocation7 + $0x198] sm:$0xff] %v504
    %588 = vst [vmem:[#allocation7 + $0x1a0] sm:$0xff] %v507
    %589 = vst [vmem:[#allocation7 + $0x1a8] sm:$0xff] %v509
    %590 = vst [vmem:[#allocation7 + $0x1b0] sm:$0xff] %v512
    %591 = vst [vmem:[#allocation7 + $0x1b8] sm:$0xff] %v514
    %592 = vst [vmem:[#allocation7 + $0x1c0] sm:$0xff] %v517
    %593 = vst [vmem:[#allocation7 + $0x1c8] sm:$0xff] %v519
    %594 = vst [vmem:[#allocation7 + $0x1d0] sm:$0xff] %v522
    %595 = vst [vmem:[#allocation7 + $0x1d8] sm:$0xff] %v524
    %596 = vst [vmem:[#allocation7 + $0x1e0] sm:$0xff] %v527
    %597 = vst [vmem:[#allocation7 + $0x1e8] sm:$0xff] %v529
    %598 = vst [vmem:[#allocation7 + $0x1f0] sm:$0xff] %v532
    %599 = vst [vmem:[#allocation7 + $0x1f8] sm:$0xff] %v534
    %v600 = vadd.f32 %v377, %v379
    %v601 = vadd.f32 %v600, %v382
    %v602 = vadd.f32 %v601, %v384
    %v603 = vadd.f32 %v602, %v387
    %v604 = vadd.f32 %v603, %v389
    %v605 = vadd.f32 %v604, %v392
    %v606 = vadd.f32 %v605, %v394
    %v607 = vadd.f32 %v606, %v397
    %v608 = vadd.f32 %v607, %v399
    %v609 = vadd.f32 %v608, %v402
    %v610 = vadd.f32 %v609, %v404
    %v611 = vadd.f32 %v610, %v407
    %v612 = vadd.f32 %v611, %v409
    %v613 = vadd.f32 %v612, %v412
    %v614 = vadd.f32 %v613, %v414
    %v615 = vadd.f32 %v614, %v417
    %v616 = vadd.f32 %v615, %v419
    %v617 = vadd.f32 %v616, %v422
    %v618 = vadd.f32 %v617, %v424
    %v619 = vadd.f32 %v618, %v427
    %v620 = vadd.f32 %v619, %v429
    %v621 = vadd.f32 %v620, %v432
    %v622 = vadd.f32 %v621, %v434
    %v623 = vadd.f32 %v622, %v437
    %v624 = vadd.f32 %v623, %v439
    %v625 = vadd.f32 %v624, %v442
    %v626 = vadd.f32 %v625, %v444
    %v627 = vadd.f32 %v626, %v447
    %v628 = vadd.f32 %v627, %v449
    %v629 = vadd.f32 %v628, %v452
    %v630 = vadd.f32 %v629, %v454
    %v631 = vadd.f32 %v630, %v457
    %v632 = vadd.f32 %v631, %v459
    %v633 = vadd.f32 %v632, %v462
    %v634 = vadd.f32 %v633, %v464
    %v635 = vadd.f32 %v634, %v467
    %v636 = vadd.f32 %v635, %v469
    %v637 = vadd.f32 %v636, %v472
    %v638 = vadd.f32 %v637, %v474
    %v639 = vadd.f32 %v638, %v477
    %v640 = vadd.f32 %v639, %v479
    %v641 = vadd.f32 %v640, %v482
    %v642 = vadd.f32 %v641, %v484
    %v643 = vadd.f32 %v642, %v487
    %v644 = vadd.f32 %v643, %v489
    %v645 = vadd.f32 %v644, %v492
    %v646 = vadd.f32 %v645, %v494
    %v647 = vadd.f32 %v646, %v497
    %v648 = vadd.f32 %v647, %v499
    %v649 = vadd.f32 %v648, %v502
    %v650 = vadd.f32 %v649, %v504
    %v651 = vadd.f32 %v650, %v507
    %v652 = vadd.f32 %v651, %v509
    %v653 = vadd.f32 %v652, %v512
    %v654 = vadd.f32 %v653, %v514
    %v655 = vadd.f32 %v654, %v517
    %v656 = vadd.f32 %v655, %v519
    %v657 = vadd.f32 %v656, %v522
    %v658 = vadd.f32 %v657, %v524
    %v659 = vadd.f32 %v658, %v527
    %v660 = vadd.f32 %v659, %v529
    %v661 = vadd.f32 %v660, %v532
    %v662 = vadd.f32 %v661, %v534
    %v663 = vrot.slane %v662, 4
    %v664 = vadd.f32 %v662, %v663
    %v665 = vrot.slane %v664, 2
    %v666 = vadd.f32 %v664, %v665
    %v667 = vrot.slane %v666, 1
    %v668 = vadd.f32 %v666, %v667
    %v669 = vmul.f32 %v377, %v377
    %v670 = vmul.f32 %v379, %v379
    %v671 = vmul.f32 %v382, %v382
    %v672 = vmul.f32 %v384, %v384
    %v673 = vmul.f32 %v387, %v387
    %v674 = vmul.f32 %v389, %v389
    %v675 = vmul.f32 %v392, %v392
    %v676 = vmul.f32 %v394, %v394
    %v677 = vmul.f32 %v397, %v397
    %v678 = vmul.f32 %v399, %v399
    %v679 = vmul.f32 %v402, %v402
    %v680 = vmul.f32 %v404, %v404
    %v681 = vmul.f32 %v407, %v407
    %v682 = vmul.f32 %v409, %v409
    %v683 = vmul.f32 %v412, %v412
    %v684 = vmul.f32 %v414, %v414
    %v685 = vmul.f32 %v417, %v417
    %v686 = vmul.f32 %v419, %v419
    %v687 = vmul.f32 %v422, %v422
    %v688 = vmul.f32 %v424, %v424
    %v689 = vmul.f32 %v427, %v427
    %v690 = vmul.f32 %v429, %v429
    %v691 = vmul.f32 %v432, %v432
    %v692 = vmul.f32 %v434, %v434
    %v693 = vmul.f32 %v437, %v437
    %v694 = vmul.f32 %v439, %v439
    %v695 = vmul.f32 %v442, %v442
    %v696 = vmul.f32 %v444, %v444
    %v697 = vmul.f32 %v447, %v447
    %v698 = vmul.f32 %v449, %v449
    %v699 = vmul.f32 %v452, %v452
    %v700 = vmul.f32 %v454, %v454
    %v701 = vmul.f32 %v457, %v457
    %v702 = vmul.f32 %v459, %v459
    %v703 = vmul.f32 %v462, %v462
    %v704 = vmul.f32 %v464, %v464
    %v705 = vmul.f32 %v467, %v467
    %v706 = vmul.f32 %v469, %v469
    %v707 = vmul.f32 %v472, %v472
    %v708 = vmul.f32 %v474, %v474
    %v709 = vmul.f32 %v477, %v477
    %v710 = vmul.f32 %v479, %v479
    %v711 = vmul.f32 %v482, %v482
    %v712 = vmul.f32 %v484, %v484
    %v713 = vmul.f32 %v487, %v487
    %v714 = vmul.f32 %v489, %v489
    %v715 = vmul.f32 %v492, %v492
    %v716 = vmul.f32 %v494, %v494
    %v717 = vmul.f32 %v497, %v497
    %v718 = vmul.f32 %v499, %v499
    %v719 = vmul.f32 %v502, %v502
    %v720 = vmul.f32 %v504, %v504
    %v721 = vmul.f32 %v507, %v507
    %v722 = vmul.f32 %v509, %v509
    %v723 = vmul.f32 %v512, %v512
    %v724 = vmul.f32 %v514, %v514
    %v725 = vmul.f32 %v517, %v517
    %v726 = vmul.f32 %v519, %v519
    %v727 = vmul.f32 %v522, %v522
    %v728 = vmul.f32 %v524, %v524
    %v729 = vmul.f32 %v527, %v527
    %v730 = vmul.f32 %v529, %v529
    %v731 = vmul.f32 %v532, %v532
    %v732 = vmul.f32 %v534, %v534
    %v733 = vadd.f32 %v669, %v670
    %v734 = vadd.f32 %v733, %v671
    %v735 = vadd.f32 %v734, %v672
    %v736 = vadd.f32 %v735, %v673
    %v737 = vadd.f32 %v736, %v674
    %v738 = vadd.f32 %v737, %v675
    %v739 = vadd.f32 %v738, %v676
    %v740 = vadd.f32 %v739, %v677
    %v741 = vadd.f32 %v740, %v678
    %v742 = vadd.f32 %v741, %v679
    %v743 = vadd.f32 %v742, %v680
    %v744 = vadd.f32 %v743, %v681
    %v745 = vadd.f32 %v744, %v682
    %v746 = vadd.f32 %v745, %v683
    %v747 = vadd.f32 %v746, %v684
    %v748 = vadd.f32 %v747, %v685
    %v749 = vadd.f32 %v748, %v686
    %v750 = vadd.f32 %v749, %v687
    %v751 = vadd.f32 %v750, %v688
    %v752 = vadd.f32 %v751, %v689
    %v753 = vadd.f32 %v752, %v690
    %v754 = vadd.f32 %v753, %v691
    %v755 = vadd.f32 %v754, %v692
    %v756 = vadd.f32 %v755, %v693
    %v757 = vadd.f32 %v756, %v694
    %v758 = vadd.f32 %v757, %v695
    %v759 = vadd.f32 %v758, %v696
    %v760 = vadd.f32 %v759, %v697
    %v761 = vadd.f32 %v760, %v698
    %v762 = vadd.f32 %v761, %v699
    %v763 = vadd.f32 %v762, %v700
    %v764 = vadd.f32 %v763, %v701
    %v765 = vadd.f32 %v764, %v702
    %v766 = vadd.f32 %v765, %v703
    %v767 = vadd.f32 %v766, %v704
    %v768 = vadd.f32 %v767, %v705
    %v769 = vadd.f32 %v768, %v706
    %v770 = vadd.f32 %v769, %v707
    %v771 = vadd.f32 %v770, %v708
    %v772 = vadd.f32 %v771, %v709
    %v773 = vadd.f32 %v772, %v710
    %v774 = vadd.f32 %v773, %v711
    %v775 = vadd.f32 %v774, %v712
    %v776 = vadd.f32 %v775, %v713
    %v777 = vadd.f32 %v776, %v714
    %v778 = vadd.f32 %v777, %v715
    %v779 = vadd.f32 %v778, %v716
    %v780 = vadd.f32 %v779, %v717
    %v781 = vadd.f32 %v780, %v718
    %v782 = vadd.f32 %v781, %v719
    %v783 = vadd.f32 %v782, %v720
    %v784 = vadd.f32 %v783, %v721
    %v785 = vadd.f32 %v784, %v722
    %v786 = vadd.f32 %v785, %v723
    %v787 = vadd.f32 %v786, %v724
    %v788 = vadd.f32 %v787, %v725
    %v789 = vadd.f32 %v788, %v726
    %v790 = vadd.f32 %v789, %v727
    %v791 = vadd.f32 %v790, %v728
    %v792 = vadd.f32 %v791, %v729
    %v793 = vadd.f32 %v792, %v730
    %v794 = vadd.f32 %v793, %v731
    %v795 = vadd.f32 %v794, %v732
    %v796 = vrot.slane %v795, 4
    %v797 = vadd.f32 %v795, %v796
    %v798 = vrot.slane %v797, 2
    %v799 = vadd.f32 %v797, %v798
    %v800 = vrot.slane %v799, 1
    %v801 = vadd.f32 %v799, %v800
    %vm802 = vcmask 1040384
    %v803 = vsel %vm802, %v668, %v801
    %vm804 = vcmask 1041408
    %v805 = vsel %vm804, %v803, 0.0
    %806 = vst [vmem:[#allocation8] sm:$0xff] %v805
    // Predicated region
    $region18: #{tpu_custom_call.1} parent=1 // pred_check
      _
    $region19: #{tpu_custom_call.1} parent=1 // pred_check_branch
      %808 = sbr.rel (0) target = $region21
    $region20: #{tpu_custom_call.1} parent=1 // pred_region
      %810 = vsyncadd [#allocation4], 0
      %s811 = sshll.u32 [#allocation7], 4
      %s812 = int_to_ptr.vmem [resolvable:$true] %s811
      %s813 = sshll.u32 %s2, 4
      %s814 = int_to_ptr.hbm [resolvable:$true] %s813
      %819 = dma.vmem_to_hbm [thread:$0]  %s812, 8192, %s814, [#allocation4], 128, 128, 8
    $region21: #{tpu_custom_call.1} parent=1 // pred_fallthru
      _
    // Predicated region
    $region22: #{tpu_custom_call.1} parent=1 // pred_check
      _
    $region23: #{tpu_custom_call.1} parent=1 // pred_check_branch
      %821 = sbr.rel (0) target = $region25
    $region24: #{tpu_custom_call.1} parent=1 // pred_region
      %823 = vsyncadd [#allocation9], 0
      %s825 = sshll.u32 [#allocation8], 4
      %s826 = int_to_ptr.vmem [resolvable:$true] %s825
      %s827 = sshll.u32 %s3, 4
      %s828 = int_to_ptr.hbm [resolvable:$true] %s827
      %830 = dma.vmem_to_hbm [thread:$0]  %s826, 128, %s828, [#allocation9]
    $region25: #{tpu_custom_call.1} parent=1 // pred_fallthru
      _
    // Predicated region
    $region26: #{tpu_custom_call.1} parent=1 // pred_check
      _
    $region27: #{tpu_custom_call.1} parent=1 // pred_check_branch
      %832 = sbr.rel (0) target = $region29
    $region28: #{tpu_custom_call.1} parent=1 // pred_region
      %834 = dma.done [#allocation4], 8192
    $region29: #{tpu_custom_call.1} parent=1 // pred_fallthru
      _
    // Predicated region
    $region30: #{tpu_custom_call.1} parent=1 // pred_check
      _
    $region31: #{tpu_custom_call.1} parent=1 // pred_check_branch
      %836 = sbr.rel (0) target = $region33
    $region32: #{tpu_custom_call.1} parent=1 // pred_region
      %838 = dma.done [#allocation9], 128
    $region33: #{tpu_custom_call.1} parent=1 // pred_fallthru
      _
    %839 = vsyncpa [#allocation3], 1
    %840 = vsyncpa [#allocation6], 1
    %841 = vsyncpa [#allocation4], 1
    %842 = vsyncpa [#allocation9], 1

</llo_original>
